<compile_context>
chip_gen: v7x
topology: tpu7x:2x2x1
jax: 0.10.0
libtpu: 0.0.40
codegen_flags: <defaults>
</compile_context>

<pallas_src>
import functools

import jax
import jax.numpy as jnp
from jax.experimental import pallas as pl
from jax.experimental.pallas import tpu as pltpu


def _focal_loss_kernel(x_ref, t_ref, out_ref, acc_ref, *, gamma, compute_dtype):
    j = pl.program_id(2)

    @pl.when(j == 0)
    def _():
        acc_ref[...] = jnp.zeros_like(acc_ref)

    x = x_ref[0]          # (C, R, 128): class slabs, samples dense on (sublane, lane)
    t = t_ref[0, 0]       # (R, 128) int32 class ids, -1 marks padding

    xc = x.astype(compute_dtype)
    # Class reductions are over the leading slab axis -> pure VPU elementwise ops.
    m = jnp.max(xc, axis=0)                                        # (R, 128)
    z = xc - m[None]                                               # (C, R, 128)
    sum_e = jnp.sum(jnp.exp(z).astype(jnp.float32), axis=0)        # (R, 128) f32
    lse = jnp.log(sum_e)                                           # (R, 128)

    cls = jax.lax.broadcasted_iota(jnp.int32, z.shape, 0)          # (C, R, 128)
    z_t = jnp.sum(jnp.where(cls == t[None], z.astype(jnp.float32), 0.0),
                  axis=0)                                          # (R, 128)

    logpt = z_t - lse
    pt = jnp.exp(logpt)
    ce = -logpt                       # loss_fn = cross-entropy, reduction='none'

    if gamma == 0:
        focal = ce
    else:
        one_minus_pt = 1.0 - pt
        if float(gamma) == int(gamma) and gamma > 0:
            # integer fast path -> plain VPU multiplies (keeps the EUP for the exps)
            w = one_minus_pt
            for _ in range(int(gamma) - 1):
                w = w * one_minus_pt
        else:
            w = one_minus_pt ** gamma
        focal = w * ce

    # mask out padded samples (sentinel target -1)
    focal = jnp.where(t >= 0, focal, 0.0)

    # layout-preserving sublane-block fold into a single (8,128) accumulator (VPU adds)
    acc_ref[...] += focal.reshape(-1, 8, 128).sum(axis=0)

    @pl.when(j == pl.num_programs(2) - 1)
    def _():
        # one cross-lane reduce per (image, chunk), outside the hot loop
        out_ref[...] = jnp.sum(acc_ref[...]).reshape(1, 1, 1, 1)

    # TODO(synk): alpha gather intentionally omitted - in this reference forward the
    # alpha-scaled logpt is dead code (never reaches the returned loss).


def _cdiv(a, b):
    return -(-a // b)


def _round_up(a, b):
    return _cdiv(a, b) * b


def _pick_tile_rows(C, itemsize, budget_bytes, cap_rows=512):
    """Largest row-tile (multiple of 8, <= cap_rows) whose TRUE double-buffered VMEM
    footprint fits the budget. With the (C, rows, 128) layout every tile is fully
    sublane-dense, so the footprint is exactly what is computed here (no hidden
    sublane padding)."""
    best = 8
    for r in range(8, cap_rows + 1, 8):
        footprint = (2 * C * r * 128 * itemsize   # double-buffered logits blocks
                     + 2 * r * 128 * 4            # double-buffered int32 target blocks
                     + 8 * 128 * 4                # (8,128) f32 accumulator scratch
                     + 8192)                      # output block / misc slack
        if footprint <= budget_bytes:
            best = r
        else:
            break
    return best


def focal_loss_wrap(x, target, *, gamma=2, size_average=True):
    """x: (N, C, H, W) float logits; target: (N, H, W) int class ids."""
    N, C, H, W = x.shape
    HW = H * W
    M = N * HW

    # --- generation-aware VMEM budget (safe on v7x's 64 MiB per-TC VMEM) ---
    try:
        vmem_cap = int(pltpu.get_tpu_info().vmem_capacity_bytes)
    except Exception:
        vmem_cap = 64 * 1024 * 1024
    vmem_limit = min(vmem_cap, 32 * 1024 * 1024)
    budget = (vmem_limit * 3) // 4

    itemsize = jnp.dtype(x.dtype).itemsize

    # --- tiling: samples dense on both sublane and lane axes ---
    rows_raw = _cdiv(HW, 128)
    # >= 2 balanced "parallel" chunks per image so both v7x TensorCores work even for N==1
    n_par = 2 if rows_raw >= 16 else 1
    rows_chunk0 = _round_up(_cdiv(rows_raw, n_par), 8)
    tile_rows = min(_pick_tile_rows(C, itemsize, budget), rows_chunk0)
    rows_chunk = _round_up(rows_chunk0, tile_rows)
    steps = rows_chunk // tile_rows
    rows_total = n_par * rows_chunk
    HW_total = rows_total * 128

    # Free reshapes (no transpose): the NCHW->(M,C) transpose of the reference is folded
    # into the in-kernel layout (classes as leading slabs, samples on sublane+lane).
    xr = x.reshape(N, C, HW)
    tr = target.reshape(N, HW).astype(jnp.int32)
    # TODO(synk): target could be fed as int16/int8 to cut HBM traffic further; kept
    # int32 to avoid sub-32-bit sublane-granularity layout constraints.
    pad = HW_total - HW
    if pad:
        xr = jnp.pad(xr, ((0, 0), (0, 0), (0, pad)))
        tr = jnp.pad(tr, ((0, 0), (0, pad)), constant_values=-1)
    xr = xr.reshape(N, C, rows_total, 128)
    tr = tr.reshape(N, 1, rows_total, 128)

    compute_dtype = (jnp.bfloat16 if jnp.dtype(x.dtype) == jnp.dtype(jnp.bfloat16)
                     else jnp.float32)
    kernel = functools.partial(_focal_loss_kernel, gamma=gamma,
                               compute_dtype=compute_dtype)

    partials = pl.pallas_call(
        kernel,
        out_shape=jax.ShapeDtypeStruct((N, n_par, 1, 1), jnp.float32),
        grid_spec=pltpu.PrefetchScalarGridSpec(
            num_scalar_prefetch=0,
            grid=(N, n_par, steps),
            in_specs=[
                pl.BlockSpec((1, C, tile_rows, 128),
                             lambda n, p, j: (n, 0, p * steps + j, 0)),
                pl.BlockSpec((1, 1, tile_rows, 128),
                             lambda n, p, j: (n, 0, p * steps + j, 0)),
            ],
            out_specs=pl.BlockSpec((1, 1, 1, 1), lambda n, p, j: (n, p, 0, 0)),
            scratch_shapes=[pltpu.VMEM((8, 128), jnp.float32)],
        ),
        compiler_params=pltpu.CompilerParams(
            dimension_semantics=("parallel", "parallel", "arbitrary"),
            vmem_limit_bytes=vmem_limit,
        ),
    )(xr, tr)

    loss_sum = jnp.sum(partials)
    if size_average:
        return loss_sum / jnp.float32(M)
    return loss_sum


def _reference(x, target, gamma=2, size_average=True):
    """Pure-JAX reference of the PyTorch forward (loss_fn = CE reduction='none')."""
    N, C, H, W = x.shape
    xr = jnp.transpose(x, (0, 2, 3, 1)).reshape(-1, C).astype(jnp.float32)
    t = target.reshape(-1).astype(jnp.int32)
    logsm = jax.nn.log_softmax(xr, axis=-1)
    logpt = jnp.take_along_axis(logsm, t[:, None], axis=1)[:, 0]
    pt = jnp.exp(logpt)
    ce = -logpt
    loss = (1.0 - pt) ** gamma * ce
    return loss.mean() if size_average else loss.sum()


if __name__ == "__main__":
    key = jax.random.PRNGKey(0)
    kx, kt = jax.random.split(key)

    N, C, H, W = 2, 4, 16, 16
    x = jax.random.normal(kx, (N, C, H, W), dtype=jnp.float32)
    target = jax.random.randint(kt, (N, H, W), 0, C, dtype=jnp.int32)

    out = focal_loss_wrap(x, target, gamma=2, size_average=True)
    out = jax.block_until_ready(out)

    ref = _reference(x, target, gamma=2, size_average=True)
    assert jnp.allclose(out, ref, rtol=1e-5, atol=1e-6), (out, ref)

    print("KERNEL_OK")
</pallas_src>

<mosaic_0001>
module attributes {stable_mosaic.version = 11 : i64} {
  func.func @_focal_loss_kernel(%arg0: i32, %arg1: i32, %arg2: i32, %arg3: memref<1x4x8x128xf32, #tpu.memory_space<vmem>>, %arg4: memref<1x1x8x128xi32, #tpu.memory_space<vmem>>, %arg5: memref<1x1x1x1xf32, #tpu.memory_space<vmem>>, %arg6: memref<8x128xf32, #tpu.memory_space<vmem>>) attributes {dimension_semantics = [#tpu.dimension_semantics<parallel>, #tpu.dimension_semantics<parallel>, #tpu.dimension_semantics<arbitrary>], iteration_bounds = array<i64: 2, 1, 1>, scalar_prefetch = 0 : i64, scratch_operands = 1 : i64, tpu.core_type = #tpu.core_type<tc>, window_params = [{transform_indices = @transform_0, window_bounds = array<i64: 1, 4, 8, 128>}, {transform_indices = @transform_1, window_bounds = array<i64: 1, 1, 8, 128>}, {transform_indices = @transform_2, window_bounds = array<i64: 1, 1, 1, 1>}]} {
    %c0_i32 = arith.constant 0 : i32
    %0 = arith.cmpi eq, %arg2, %c0_i32 : i32
    %1 = arith.extui %0 : i1 to i32
    %c0_i32_0 = arith.constant 0 : i32
    %2 = arith.cmpi ne, %1, %c0_i32_0 : i32
    scf.if %2 {
      %cst_22 = arith.constant 0.000000e+00 : f32
      %41 = vector.broadcast %cst_22 : f32 to vector<8x128xf32>
      %c0_23 = arith.constant 0 : index
      %c0_24 = arith.constant 0 : index
      %42 = vector.load %arg6[%c0_23, %c0_24] : memref<8x128xf32, #tpu.memory_space<vmem>>, vector<8x128xf32>
      tpu.vector_store %arg6[%c0_23, %c0_24], %41 {strides = array<i32>} : memref<8x128xf32, #tpu.memory_space<vmem>>, vector<8x128xf32>,
    } else {
    }
    %c0 = arith.constant 0 : index
    %c0_1 = arith.constant 0 : index
    %c0_2 = arith.constant 0 : index
    %c0_3 = arith.constant 0 : index
    %3 = vector.load %arg3[%c0, %c0_1, %c0_2, %c0_3] : memref<1x4x8x128xf32, #tpu.memory_space<vmem>>, vector<1x4x8x128xf32>
    %4 = vector.shape_cast %3 : vector<1x4x8x128xf32> to vector<4x8x128xf32>
    %c0_4 = arith.constant 0 : index
    %c0_5 = arith.constant 0 : index
    %c0_6 = arith.constant 0 : index
    %c0_7 = arith.constant 0 : index
    %5 = vector.load %arg4[%c0_4, %c0_5, %c0_6, %c0_7] : memref<1x1x8x128xi32, #tpu.memory_space<vmem>>, vector<1x1x8x128xi32>
    %6 = vector.shape_cast %5 : vector<1x1x8x128xi32> to vector<8x128xi32>
    %cst = arith.constant dense<0xFF800000> : vector<8x128xf32>
    %7 = vector.multi_reduction <maximumf>, %4, %cst [0] : vector<4x8x128xf32> to vector<8x128xf32>
    %8 = vector.shape_cast %7 : vector<8x128xf32> to vector<1x8x128xf32>
    %9 = vector.broadcast %8 : vector<1x8x128xf32> to vector<4x8x128xf32>
    %10 = arith.subf %4, %9 : vector<4x8x128xf32>
    %11 = math.exp %10 : vector<4x8x128xf32>
    %cst_8 = arith.constant dense<0.000000e+00> : vector<8x128xf32>
    %12 = vector.multi_reduction <add>, %11, %cst_8 [0] : vector<4x8x128xf32> to vector<8x128xf32>
    %13 = math.log %12 : vector<8x128xf32>
    %14 = tpu.iota {dimensions = array<i32: 0>} : vector<4x8x128xi32>
    %15 = vector.shape_cast %6 : vector<8x128xi32> to vector<1x8x128xi32>
    %16 = vector.broadcast %15 : vector<1x8x128xi32> to vector<4x8x128xi32>
    %17 = arith.cmpi eq, %14, %16 : vector<4x8x128xi32>
    %cst_9 = arith.constant 0.000000e+00 : f32
    %18 = vector.broadcast %cst_9 : f32 to vector<4x8x128xf32>
    %19 = arith.select %17, %10, %18 : vector<4x8x128xi1>, vector<4x8x128xf32>
    %cst_10 = arith.constant dense<0.000000e+00> : vector<8x128xf32>
    %20 = vector.multi_reduction <add>, %19, %cst_10 [0] : vector<4x8x128xf32> to vector<8x128xf32>
    %21 = arith.subf %20, %13 : vector<8x128xf32>
    %22 = math.exp %21 : vector<8x128xf32>
    %cst_11 = arith.constant 0.000000e+00 : f32
    %23 = vector.broadcast %cst_11 : f32 to vector<8x128xf32>
    %24 = arith.subf %23, %21 : vector<8x128xf32>
    %cst_12 = arith.constant 1.000000e+00 : f32
    %25 = vector.broadcast %cst_12 : f32 to vector<8x128xf32>
    %26 = arith.subf %25, %22 : vector<8x128xf32>
    %27 = arith.mulf %26, %26 : vector<8x128xf32>
    %28 = arith.mulf %27, %24 : vector<8x128xf32>
    %c0_i32_13 = arith.constant 0 : i32
    %29 = vector.broadcast %c0_i32_13 : i32 to vector<8x128xi32>
    %30 = arith.cmpi sge, %6, %29 : vector<8x128xi32>
    %cst_14 = arith.constant 0.000000e+00 : f32
    %31 = vector.broadcast %cst_14 : f32 to vector<8x128xf32>
    %32 = arith.select %30, %28, %31 : vector<8x128xi1>, vector<8x128xf32>
    %c0_15 = arith.constant 0 : index
    %c0_16 = arith.constant 0 : index
    %33 = vector.load %arg6[%c0_15, %c0_16] : memref<8x128xf32, #tpu.memory_space<vmem>>, vector<8x128xf32>
    %34 = vector.shape_cast %32 : vector<8x128xf32> to vector<1x8x128xf32>
    %cst_17 = arith.constant dense<0.000000e+00> : vector<8x128xf32>
    %35 = vector.multi_reduction <add>, %34, %cst_17 [0] : vector<1x8x128xf32> to vector<8x128xf32>
    %36 = arith.addf %33, %35 : vector<8x128xf32>
    %c0_18 = arith.constant 0 : index
    %c0_19 = arith.constant 0 : index
    %37 = vector.load %arg6[%c0_18, %c0_19] : memref<8x128xf32, #tpu.memory_space<vmem>>, vector<8x128xf32>
    tpu.vector_store %arg6[%c0_18, %c0_19], %36 {strides = array<i32>} : memref<8x128xf32, #tpu.memory_space<vmem>>, vector<8x128xf32>,
    %c0_i32_20 = arith.constant 0 : i32
    %38 = arith.cmpi eq, %arg2, %c0_i32_20 : i32
    %39 = arith.extui %38 : i1 to i32
    %c0_i32_21 = arith.constant 0 : i32
    %40 = arith.cmpi ne, %39, %c0_i32_21 : i32
    scf.if %40 {
      %c0_22 = arith.constant 0 : index
      %c0_23 = arith.constant 0 : index
      %41 = vector.load %arg6[%c0_22, %c0_23] : memref<8x128xf32, #tpu.memory_space<vmem>>, vector<8x128xf32>
      %42 = vector.shape_cast %41 : vector<8x128xf32> to vector<1x8x128xf32>
      %cst_24 = arith.constant dense<0.000000e+00> : vector<1xf32>
      %43 = vector.multi_reduction <add>, %42, %cst_24 [1, 2] : vector<1x8x128xf32> to vector<1xf32>
      %44 = vector.shape_cast %43 : vector<1xf32> to vector<1x1x1xf32>
      %45 = vector.extract %44[0, 0, 0] : f32 from vector<1x1x1xf32>
      %46 = vector.broadcast %45 : f32 to vector<1x1x1x1xf32>
      %c0_25 = arith.constant 0 : index
      %c0_26 = arith.constant 0 : index
      %c0_27 = arith.constant 0 : index
      %c0_28 = arith.constant 0 : index
      %47 = vector.load %arg5[%c0_25, %c0_26, %c0_27, %c0_28] : memref<1x1x1x1xf32, #tpu.memory_space<vmem>>, vector<1x1x1x1xf32>
      tpu.vector_store %arg5[%c0_25, %c0_26, %c0_27, %c0_28], %46 {strides = array<i32>} : memref<1x1x1x1xf32, #tpu.memory_space<vmem>>, vector<1x1x1x1xf32>,
    } else {
    }
    return
  }
  func.func @transform_0(%arg0: i32, %arg1: i32, %arg2: i32) -> (i32, i32, i32, i32) {
    %c1_i32 = arith.constant 1 : i32
    %0 = arith.muli %arg1, %c1_i32 : i32
    %1 = arith.addi %0, %arg2 : i32
    %c0_i32 = arith.constant 0 : i32
    %c0_i32_0 = arith.constant 0 : i32
    %c0_i32_1 = arith.constant 0 : i32
    return %arg0, %c0_i32, %1, %c0_i32_0 : i32, i32, i32, i32
  }
  func.func @transform_1(%arg0: i32, %arg1: i32, %arg2: i32) -> (i32, i32, i32, i32) {
    %c1_i32 = arith.constant 1 : i32
    %0 = arith.muli %arg1, %c1_i32 : i32
    %1 = arith.addi %0, %arg2 : i32
    %c0_i32 = arith.constant 0 : i32
    %c0_i32_0 = arith.constant 0 : i32
    %c0_i32_1 = arith.constant 0 : i32
    return %arg0, %c0_i32, %1, %c0_i32_0 : i32, i32, i32, i32
  }
  func.func @transform_2(%arg0: i32, %arg1: i32, %arg2: i32) -> (i32, i32, i32, i32) {
    %c0_i32 = arith.constant 0 : i32
    %c0_i32_0 = arith.constant 0 : i32
    %c0_i32_1 = arith.constant 0 : i32
    return %arg0, %arg1, %c0_i32, %c0_i32_0 : i32, i32, i32, i32
  }
}

</mosaic_0001>

<llo_original>
// kernel: tpu_custom_call.1
$region0: #{tpu_custom_call.1}
  #allocation0 [shape = 'u32[]', space=smem, size = 0x4, offset = 0x4, fixed_abs, tag = 'smem constant byte address 0x4 - core index']
  #allocation1 [shape = 'u32[144,128]{1,0:T(1,128)}', space=vmem, size = 0x12000, scoped, tag = 'internal scratch']
  #allocation2 [shape = 'f32[8,128]{1,0:T(8,128)}', space=vmem, size = 0x1000, scoped, tag = 'scratch operand']
  %s0 = inlined_call_operand.hbm [shape: f32[2,4,8,128], index: 0, kind: input, shape index: {}]
  %s1 = inlined_call_operand.hbm [shape: s32[2,1,8,128], index: 1, kind: input, shape index: {}]
  %s2 = inlined_call_operand.vmem [shape: f32[2,1,1,1], index: 2, kind: output, shape index: {}]
  %s3 = sld [smem:[#allocation0]]
  $region57: #{tpu_custom_call.1} parent=0
    _
  %s5 = ssub.s32 1, %s3
  %s6 = scalar_select 0, %s5, %s3
  $region1: #{tpu_custom_call.1} parent=0
    #allocation3 [shape = 'u8[32768]{0}', space=vmem, size = 0x8000, scoped, tag = 'input window, operand 0']
    #allocation4 [shape = 's32[2]{0}', space=sflag, size = 0x8, scoped, tag = 'scoped memory for tpu_custom_call.1']
    #allocation5 [shape = 'u8[8192]{0}', space=vmem, size = 0x2000, scoped, tag = 'input window, operand 1']
    #allocation6 [shape = 's32[2]{0}', space=sflag, size = 0x8, scoped, tag = 'scoped memory for tpu_custom_call.1']
    %7 = vsyncpa [#allocation4], 0
    %s8 = scalar_lea.sflag [#allocation4], 1
    %9 = vsyncpa %s8, 0
    %10 = vsyncpa [#allocation6], 0
    %s11 = scalar_lea.sflag [#allocation6], 1
    %12 = vsyncpa %s11, 0
    loop: start=0, step=1, limit=4
    $region2: #{tpu_custom_call.1} parent=1 // loop_pre_header
      _
    $region3: #{tpu_custom_call.1} parent=1 // loop_header
      %s14 = sphi 0, %s18
      %p15 = scmp.ge.s32.totalorder %s14, 4
      %s21 = sphi 0, %s40
      %s22 = sphi 0, %s36
      %s23 = sphi 0, %s32
      %s24 = sphi 0, %s21
      %s25 = sphi 0, %s22
      %s26 = sphi 0, %s23
      %s27 = sphi 0, %s24
      %s28 = sphi 0, %s25
      %s29 = sphi 0, %s26
      %s47 = sphi 0, %s49
      %s50 = sphi 0, %s47
      %s51 = sphi 0, %s50
      %s67 = sphi 0, %s51
      %s77 = sphi 0, %s79
      %s80 = sphi 0, %s77
      %s81 = sphi 0, %s80
      %s97 = sphi 0, %s81
      %s105 = sphi 0, %s107
      %s108 = sphi 0, %s105
      %s109 = sphi 0, %s108
      %s125 = sphi 0, %s109
    $region4: #{tpu_custom_call.1} parent=1 // loop_header_branch
      %17 = sbr.rel (%p15) target = $region8
    $region5: #{tpu_custom_call.1} parent=1 // loop_body
      %s19 = ssub.s32 %s14, 1
      %s20 = ssub.s32 %s14, 2
      %s30 = sadd.s32 1, %s23
      %p31 = scmp.ge.s32.totalorder %s30, 1
      %s32 = scalar_select %p31, 0, %s30
      %s33 = sadd.s32 1, %s22
      %s34 = scalar_select %p31, %s33, %s22
      %p35 = scmp.ge.s32.totalorder %s34, 1
      %s36 = scalar_select %p35, 0, %s34
      %s37 = sadd.s32 1, %s21
      %s38 = scalar_select %p35, %s37, %s21
      %p39 = scmp.ge.s32.totalorder %s38, 2
      %s40 = scalar_select %p39, 0, %s38
      %s41 = sadd.s32 %s22, %s23
      %s42 = sadd.s32 %s36, %s32
      %s43 = ssub.s32 %s21, %s40
      %s44 = ssub.s32 %s41, %s42
      %s45 = sor.u32 %s43, %s44
      %p46 = scmp.eq.s32.totalorder %s45, 0
      %s48 = sadd.s32 %s47, 1
      %s49 = scalar_select %p46, %s47, %s48
      %p52 = pneg %p46
      %p53 = scmp.eq.s32.totalorder %s14, 1
      %p54 = por %p52, %p53
      %p55 = scmp.ne.s32.totalorder %s47, %s50
      %p56 = scmp.eq.s32.totalorder %s14, 0
      %p57 = por %p55, %p56
      %p58 = scmp.ne.s32.totalorder %s47, %s50
      %p59 = scmp.eq.s32.totalorder %s19, 1
      %p60 = por %p58, %p59
      %p61 = scmp.ne.s32.totalorder %s50, %s51
      %p62 = scmp.eq.s32.totalorder %s19, 0
      %p63 = por %p61, %p62
      %p64 = scmp.ne.s32.totalorder %s50, %s51
      %p65 = scmp.eq.s32.totalorder %s20, 1
      %p66 = por %p64, %p65
      %p68 = scmp.ne.s32.totalorder %s51, %s67
      %p69 = scmp.eq.s32.totalorder %s20, 0
      %p70 = por %p68, %p69
      %s71 = sadd.s32 %s22, %s23
      %s72 = sadd.s32 %s36, %s32
      %s73 = ssub.s32 %s21, %s40
      %s74 = ssub.s32 %s71, %s72
      %s75 = sor.u32 %s73, %s74
      %p76 = scmp.eq.s32.totalorder %s75, 0
      %s78 = sadd.s32 %s77, 1
      %s79 = scalar_select %p76, %s77, %s78
      %p82 = pneg %p76
      %p83 = scmp.eq.s32.totalorder %s14, 1
      %p84 = por %p82, %p83
      %p85 = scmp.ne.s32.totalorder %s77, %s80
      %p86 = scmp.eq.s32.totalorder %s14, 0
      %p87 = por %p85, %p86
      %p88 = scmp.ne.s32.totalorder %s77, %s80
      %p89 = scmp.eq.s32.totalorder %s19, 1
      %p90 = por %p88, %p89
      %p91 = scmp.ne.s32.totalorder %s80, %s81
      %p92 = scmp.eq.s32.totalorder %s19, 0
      %p93 = por %p91, %p92
      %p94 = scmp.ne.s32.totalorder %s80, %s81
      %p95 = scmp.eq.s32.totalorder %s20, 1
      %p96 = por %p94, %p95
      %p98 = scmp.ne.s32.totalorder %s81, %s97
      %p99 = scmp.eq.s32.totalorder %s20, 0
      %p100 = por %p98, %p99
      %s101 = ssub.s32 %s21, %s40
      %s102 = ssub.s32 %s22, %s36
      %s103 = sor.u32 %s101, %s102
      %p104 = scmp.eq.s32.totalorder %s103, 0
      %s106 = sadd.s32 %s105, 1
      %s107 = scalar_select %p104, %s105, %s106
      %p110 = pneg %p104
      %p111 = scmp.eq.s32.totalorder %s14, 1
      %p112 = por %p110, %p111
      %p113 = scmp.ne.s32.totalorder %s105, %s108
      %p114 = scmp.eq.s32.totalorder %s14, 0
      %p115 = por %p113, %p114
      %p116 = scmp.ne.s32.totalorder %s105, %s108
      %p117 = scmp.eq.s32.totalorder %s19, 1
      %p118 = por %p116, %p117
      %p119 = scmp.ne.s32.totalorder %s108, %s109
      %p120 = scmp.eq.s32.totalorder %s19, 0
      %p121 = por %p119, %p120
      %p122 = scmp.ne.s32.totalorder %s108, %s109
      %p123 = scmp.eq.s32.totalorder %s20, 1
      %p124 = por %p122, %p123
      %p126 = scmp.ne.s32.totalorder %s109, %s125
      %p127 = scmp.eq.s32.totalorder %s20, 0
      %p128 = por %p126, %p127
      %p129 = scmp.le.s32.totalorder 1, %s14
      %p130 = scmp.lt.s32.totalorder %s14, 3
      %p131 = pnand %p129, %p130
      %p132 = pneg %p131
      // Predicated region
      $region9: #{tpu_custom_call.1} parent=5 // pred_check
        _
      $region10: #{tpu_custom_call.1} parent=5 // pred_check_branch
        %134 = sbr.rel (%p131) target = $region12
      $region11: #{tpu_custom_call.1} parent=5 // pred_region
        %s135 = ssub.s32 %s14, 1
      $region12: #{tpu_custom_call.1} parent=5 // pred_fallthru
        _
      %p136 = scmp.lt.s32.totalorder %s14, 2
      // Predicated region
      $region13: #{tpu_custom_call.1} parent=5 // pred_check
        %p137 = pneg %p136
      $region14: #{tpu_custom_call.1} parent=5 // pred_check_branch
        %139 = sbr.rel (%p137) target = $region16
      $region15: #{tpu_custom_call.1} parent=5 // pred_region
        // Predicated region
        $region17: #{tpu_custom_call.1} parent=15 // pred_check
          %p140 = pneg %p57
        $region18: #{tpu_custom_call.1} parent=15 // pred_check_branch
          %142 = sbr.rel (%p140) target = $region20
        $region19: #{tpu_custom_call.1} parent=15 // pred_region
          %s143 = sand.u32 %s47, 1
          %s144 = scalar_lea.sflag [#allocation4], %s143
          %s145 = sand.u32 %s47, 1
          %s146 = smul.addr %s145, 32
          %s147 = scalar_lea.vmem [#allocation3], %s146
          %s148 = sadd.s32 %s22, %s23
          %s150 = ssub.s32 512, 512
          %151 = vsyncadd %s144, %s150
          %s152 = smul.addr %s21, 4
          %s153 = sadd.s32 %s148, %s152
          %s154 = smul.addr %s153, 128
          %s155 = scalar_lea.hbm %s0, %s154
          %s156 = sshll.u32 %s147, 4
          %s157 = int_to_ptr.vmem [resolvable:$true] %s156
          %162 = dma.hbm_to_vmem [thread:$0]  %s155, 512, %s157, %s144, 128, 128, 8
        $region20: #{tpu_custom_call.1} parent=15 // pred_fallthru
          _
        // Predicated region
        $region21: #{tpu_custom_call.1} parent=15 // pred_check
          %p163 = pneg %p87
        $region22: #{tpu_custom_call.1} parent=15 // pred_check_branch
          %165 = sbr.rel (%p163) target = $region24
        $region23: #{tpu_custom_call.1} parent=15 // pred_region
          %s166 = sand.u32 %s77, 1
          %s167 = scalar_lea.sflag [#allocation6], %s166
          %s168 = sand.u32 %s77, 1
          %s169 = smul.addr %s168, 8
          %s170 = scalar_lea.vmem [#allocation5], %s169
          %s171 = sadd.s32 %s22, %s23
          %s173 = ssub.s32 128, 128
          %174 = vsyncadd %s167, %s173
          %s175 = sadd.s32 %s171, %s21
          %s176 = smul.addr %s175, 128
          %s177 = scalar_lea.hbm %s1, %s176
          %s179 = sshll.u32 %s170, 4
          %s180 = int_to_ptr.vmem [resolvable:$true] %s179
          %182 = dma.hbm_to_vmem [thread:$0]  %s177, 128, %s180, %s167
        $region24: #{tpu_custom_call.1} parent=15 // pred_fallthru
          _
      $region16: #{tpu_custom_call.1} parent=5 // pred_fallthru
        _
      %p183 = scmp.le.s32.totalorder 1, %s14
      %p184 = scmp.lt.s32.totalorder %s14, 3
      %p185 = pnand %p183, %p184
      %p186 = pneg %p185
      // Predicated region
      $region25: #{tpu_custom_call.1} parent=5 // pred_check
        _
      $region26: #{tpu_custom_call.1} parent=5 // pred_check_branch
        %188 = sbr.rel (%p185) target = $region28
      $region27: #{tpu_custom_call.1} parent=5 // pred_region
        %s189 = ssub.s32 %s14, 1
        %s190 = sand.u32 %s50, 1
        %s191 = scalar_lea.sflag [#allocation4], %s190
        %s192 = sand.u32 %s50, 1
        %s193 = smul.addr %s192, 32
        %s194 = scalar_lea.vmem [#allocation3], %s193
        // Predicated region
        $region29: #{tpu_custom_call.1} parent=27 // pred_check
          %p195 = pneg %p63
        $region30: #{tpu_custom_call.1} parent=27 // pred_check_branch
          %197 = sbr.rel (%p195) target = $region32
        $region31: #{tpu_custom_call.1} parent=27 // pred_region
          %198 = dma.done %s191, 512
        $region32: #{tpu_custom_call.1} parent=27 // pred_fallthru
          _
        %s199 = sand.u32 %s80, 1
        %s200 = scalar_lea.sflag [#allocation6], %s199
        %s201 = sand.u32 %s80, 1
        %s202 = smul.addr %s201, 8
        %s203 = scalar_lea.vmem [#allocation5], %s202
        // Predicated region
        $region33: #{tpu_custom_call.1} parent=27 // pred_check
          %p204 = pneg %p93
        $region34: #{tpu_custom_call.1} parent=27 // pred_check_branch
          %206 = sbr.rel (%p204) target = $region36
        $region35: #{tpu_custom_call.1} parent=27 // pred_region
          %207 = dma.done %s200, 128
        $region36: #{tpu_custom_call.1} parent=27 // pred_fallthru
          _
        %s208 = sand.u32 %s50, 1
        %s209 = scalar_lea.sflag [#allocation4], %s208
        %s210 = sand.u32 %s50, 1
        %s211 = smul.addr %s210, 32
        %s212 = scalar_lea.vmem [#allocation3], %s211
        %p213 = pneg %p63
        %p214 = pneg %p60
        %s215 = sand.u32 %s80, 1
        %s216 = scalar_lea.sflag [#allocation6], %s215
        %s217 = sand.u32 %s80, 1
        %s218 = smul.addr %s217, 8
        %s219 = scalar_lea.vmem [#allocation5], %s218
        %p220 = pneg %p93
        %p221 = pneg %p90
        %p222 = pneg %p121
        %p223 = pneg %p118
        %p224 = scmp.lt.s32.totalorder %s24, 1
        %s225 = scalar_select %p224, %s24, 1
        %p226 = scmp.lt.s32.totalorder %s25, 0
        %s227 = scalar_select %p226, %s25, 0
        %s228 = sadd.s32 %s227, %s225
        %s229 = scalar_lea.vmem %s2, %s228
        %s230 = sadd.s32 %s25, %s26
        %s231 = sadd.s32 %s25, %s26
        %p232 = scmp.lt.s32.totalorder %s24, 1
        %s233 = scalar_select %p232, %s24, 1
        %p234 = scmp.lt.s32.totalorder %s25, 0
        %s235 = scalar_select %p234, %s25, 0
        %s236 = sadd.s32 %s235, %s233
        %s237 = scalar_lea.vmem %s2, %s236
        %p238 = scmp.eq.s32.totalorder %s26, 0
        // Predicated region
        $region37: #{tpu_custom_call.1} parent=27 // pred_check
          %p239 = pneg %p238
        $region38: #{tpu_custom_call.1} parent=27 // pred_check_branch
          %241 = sbr.rel (%p239) target = $region40
        $region39: #{tpu_custom_call.1} parent=27 // pred_region
          %242 = vst [vmem:[#allocation2] sm:$0xff] 0.0
        $region40: #{tpu_custom_call.1} parent=27 // pred_fallthru
          _
        %v243 = vld [vmem:[%s194] sm:$0xff]
        %v244 = vld [vmem:[%s194 + $0x8] sm:$0xff]
        %v245 = vld [vmem:[%s194 + $0x10] sm:$0xff]
        %v246 = vld [vmem:[%s194 + $0x18] sm:$0xff]
        %v247 = vld [vmem:[%s203] sm:$0xff]
        %v248 = vmax.f32 %v243, %v244
        %v249 = vmax.f32 %v245, %v246
        %v250 = vmax.f32 %v248, %v249
        %v251 = vsub.f32 %v243, %v250
        %v252 = vsub.f32 %v244, %v250
        %v253 = vsub.f32 %v245, %v250
        %v254 = vsub.f32 %v246, %v250
        %v255 = vmul.f32 %v251, 1.442695
        %v256 = vpow.pop %v255
        %v257 = vmul.f32 %v252, 1.442695
        %v258 = vpow.pop %v257
        %v259 = vmul.f32 %v253, 1.442695
        %v260 = vpow.pop %v259
        %v261 = vmul.f32 %v254, 1.442695
        %v262 = vpow.pop %v261
        %v263 = vadd.f32 %v256, %v258
        %v264 = vadd.f32 %v263, %v260
        %v265 = vadd.f32 %v264, %v262
        %v266 = vlog2.pop %v265
        %v267 = vmul.f32 %v266, 0.6931472
        %vm268 = vcmp.eq.s32.totalorder %v247, 0
        %vm269 = vcmp.eq.s32.totalorder %v247, 1
        %vm270 = vcmp.eq.s32.totalorder %v247, 2
        %vm271 = vcmp.eq.s32.totalorder %v247, 3
        %v272 = vsel %vm268, %v251, 0.0
        %v273 = vsel %vm269, %v252, 0.0
        %v274 = vsel %vm270, %v253, 0.0
        %v275 = vsel %vm271, %v254, 0.0
        %v276 = vadd.f32 %v272, %v273
        %v277 = vadd.f32 %v276, %v274
        %v278 = vadd.f32 %v277, %v275
        %v279 = vsub.f32 %v278, %v267
        %v280 = vmul.f32 %v279, 1.442695
        %v281 = vpow.pop %v280
        %v282 = vsub.f32 0.0, %v279
        %v283 = vsub.f32 1.0, %v281
        %v284 = vmul.f32 %v283, %v283
        %v285 = vmul.f32 %v284, %v282
        %vm286 = vcmp.ge.s32.totalorder %v247, 0
        %v287 = vsel %vm286, %v285, 0.0
        %v288 = vld [vmem:[#allocation2] sm:$0xff]
        %v289 = vadd.f32 %v287, 0.0
        %v290 = vadd.f32 %v288, %v289
        %291 = vst [vmem:[#allocation2] sm:$0xff] %v290
        // Predicated region
        $region41: #{tpu_custom_call.1} parent=27 // pred_check
          %p292 = pneg %p238
        $region42: #{tpu_custom_call.1} parent=27 // pred_check_branch
          %294 = sbr.rel (%p292) target = $region44
        $region43: #{tpu_custom_call.1} parent=27 // pred_region
          %v295 = vld [vmem:[#allocation2] sm:$0xff]
          %296 = vadd.xlane.f32.xlu0 %v295
          %v297 = vpop.xlane.xlu0 %296
          %v298 = vrot.slane %v297, 4
          %v299 = vadd.f32 %v297, %v298
          %v300 = vrot.slane %v299, 2
          %v301 = vadd.f32 %v299, %v300
          %v302 = vrot.slane %v301, 1
          %v303 = vadd.f32 %v301, %v302
          %s304 = vtos %v303
          %v305 = vstv %s304
          %vm306 = vcmask 0
          %307 = vst.msk [vmem:[%s237] sm:$0x1] %vm306, %v305
        $region44: #{tpu_custom_call.1} parent=27 // pred_fallthru
          _
        %p308 = scmp.lt.s32.totalorder %s24, 1
        %s309 = scalar_select %p308, %s24, 1
        %p310 = scmp.lt.s32.totalorder %s25, 0
        %s311 = scalar_select %p310, %s25, 0
        %s312 = sadd.s32 %s311, %s309
        %s313 = scalar_lea.vmem %s2, %s312
        // Predicated region
        $region45: #{tpu_custom_call.1} parent=27 // pred_check
          %p314 = pneg %p118
        $region46: #{tpu_custom_call.1} parent=27 // pred_check_branch
          %316 = sbr.rel (%p314) target = $region48
        $region47: #{tpu_custom_call.1} parent=27 // pred_region
          _
        $region48: #{tpu_custom_call.1} parent=27 // pred_fallthru
          _
      $region28: #{tpu_custom_call.1} parent=5 // pred_fallthru
        _
      %p317 = scmp.le.s32.totalorder 2, %s14
      // Predicated region
      $region49: #{tpu_custom_call.1} parent=5 // pred_check
        %p318 = pneg %p317
      $region50: #{tpu_custom_call.1} parent=5 // pred_check_branch
        %320 = sbr.rel (%p318) target = $region52
      $region51: #{tpu_custom_call.1} parent=5 // pred_region
        %s321 = ssub.s32 %s14, 2
        // Predicated region
        $region53: #{tpu_custom_call.1} parent=51 // pred_check
          %p322 = pneg %p124
        $region54: #{tpu_custom_call.1} parent=51 // pred_check_branch
          %324 = sbr.rel (%p322) target = $region56
        $region55: #{tpu_custom_call.1} parent=51 // pred_region
          %p325 = scmp.lt.s32.totalorder %s27, 1
          %s326 = scalar_select %p325, %s27, 1
          %p327 = scmp.lt.s32.totalorder %s28, 0
          %s328 = scalar_select %p327, %s28, 0
          %s329 = sadd.s32 %s328, %s326
          %s330 = scalar_lea.vmem %s2, %s329
        $region56: #{tpu_custom_call.1} parent=51 // pred_fallthru
          _
      $region52: #{tpu_custom_call.1} parent=5 // pred_fallthru
        _
    $region6: #{tpu_custom_call.1} parent=1 // loop_footer
      %s18 = sadd.s32 1, %s14
    $region7: #{tpu_custom_call.1} parent=1 // loop_footer_branch
      %13 = sbr.rel target = $region3
    $region8: #{tpu_custom_call.1} parent=1 // loop_exit
      _
    %331 = vsyncpa [#allocation4], 1
    %s332 = scalar_lea.sflag [#allocation4], 1
    %333 = vsyncpa %s332, 1
    %334 = vsyncpa [#allocation6], 1
    %s335 = scalar_lea.sflag [#allocation6], 1
    %336 = vsyncpa %s335, 1

</llo_original>
